<compile_context>
chip_gen: v7x
topology: tpu7x:2x2x1
jax: 0.10.0
libtpu: 0.0.40
codegen_flags: <defaults>
</compile_context>

<pallas_src>
import functools

import jax
import jax.numpy as jnp
from jax import lax
from jax.experimental import pallas as pl
from jax.experimental.pallas import tpu as pltpu

TEMP = 0.07
EPS = 1e-6
NORM_EPS = 1e-12                         # F.normalize default eps
_VMEM_BLOCK_BUDGET = 6 * 1024 * 1024     # per-grid-step block bytes (pre double-buffer)
_VMEM_LIMIT_BYTES = 32 * 1024 * 1024     # safe on v5e/v6e (128 MiB phys) and v7x (64 MiB)


def _cluster_assign_kernel(x_ref, pn_ref, dots_ref, proto_ref, *, inv_temp, eps, bt):
    # x_ref:     (Bt, D, HW)  raw features, channels on sublanes, HW on lanes
    # pn_ref:    (K, D)       pre-normalized prototypes (resident across the grid)
    # dots_ref:  (Bt, K, HW)
    # proto_ref: (Bt, K, D)
    pn = pn_ref[...]

    for b in range(bt):                                     # Bt small & static -> unrolled
        x = x_ref[b]                                        # (D, HW)

        # F.normalize(x, dim=1):  1 / max(||x[:, hw]||, eps)  via rsqrt
        sumsq = jnp.sum(x * x, axis=0, keepdims=True)       # (1, HW)
        inv_norm = lax.rsqrt(jnp.maximum(sumsq, NORM_EPS * NORM_EPS))

        # dots[k, hw] = <pn[k, :], x[:, hw]> * inv_norm[hw]
        dots = jnp.dot(pn, x, preferred_element_type=jnp.float32) * inv_norm  # (K, HW)

        # softmax over K (axis 0), numerically stable
        scaled = dots * inv_temp
        m = jnp.max(scaled, axis=0, keepdims=True)          # (1, HW)
        e = jnp.exp(scaled - m)
        inv_den = pl.reciprocal(jnp.sum(e, axis=0, keepdims=True), approx=True)
        attn = e * inv_den + eps                            # (K, HW)

        # normalize attention over spatial positions (sum over HW)
        attn_sum = jnp.sum(attn, axis=1, keepdims=True)     # (K, 1)
        attn_n = attn * pl.reciprocal(attn_sum, approx=True)

        # prototypes[k, d] = sum_hw x[d, hw] * attn_n[k, hw]
        proto = lax.dot_general(
            attn_n, x,
            dimension_numbers=(((1,), (1,)), ((), ())),
            preferred_element_type=jnp.float32,
        )                                                   # (K, D)

        dots_ref[b] = dots
        proto_ref[b] = proto


def _pick_batch_block(B, per_b_bytes):
    """Largest divisor of B that fits the VMEM budget and keeps >=2 grid steps."""
    budget_bt = max(1, _VMEM_BLOCK_BUDGET // per_b_bytes)
    cap = B if B < 2 else max(1, B // 2)     # >=2 parallel steps for v7x's 2 TCs
    bt = 1
    for cand in range(1, B + 1):
        if B % cand == 0 and cand <= budget_bt and cand <= cap:
            bt = cand
    return bt


def cluster_assignment(x_nchw, proto_embed, *, temp=TEMP, eps=EPS):
    """x_nchw: (B, D, H, W) float32; proto_embed: (K, D) float32.

    Returns (prototypes (B, K, D), dots (B, K, H, W)) matching the PyTorch
    module's forward.
    """
    B, D, H, W = x_nchw.shape
    K, Dp = proto_embed.shape
    assert Dp == D
    HW = H * W

    # NCHW-native layout: pure reshape, no transpose / extra HBM pass.
    x_bdn = x_nchw.reshape(B, D, HW).astype(jnp.float32)

    # Hoist prototype normalization out of the grid (tiny (K, D) op).
    p32 = proto_embed.astype(jnp.float32)
    pn = p32 * lax.rsqrt(
        jnp.maximum(jnp.sum(p32 * p32, axis=-1, keepdims=True), NORM_EPS * NORM_EPS))

    per_b_bytes = 4 * (D * HW + K * HW + K * D)   # x block + dots + proto per batch elem
    bt = _pick_batch_block(B, per_b_bytes)

    kernel = functools.partial(
        _cluster_assign_kernel, inv_temp=float(1.0 / temp), eps=float(eps), bt=bt)

    dots_bkn, proto_out = pl.pallas_call(
        kernel,
        out_shape=(
            jax.ShapeDtypeStruct((B, K, HW), jnp.float32),
            jax.ShapeDtypeStruct((B, K, D), jnp.float32),
        ),
        grid_spec=pltpu.PrefetchScalarGridSpec(
            num_scalar_prefetch=0,
            grid=(B // bt,),
            in_specs=[
                pl.BlockSpec((bt, D, HW), lambda i: (i, 0, 0)),
                pl.BlockSpec((K, D), lambda i: (0, 0)),
            ],
            out_specs=[
                pl.BlockSpec((bt, K, HW), lambda i: (i, 0, 0)),
                pl.BlockSpec((bt, K, D), lambda i: (i, 0, 0)),
            ],
        ),
        compiler_params=pltpu.CompilerParams(
            dimension_semantics=("parallel",),
            vmem_limit_bytes=_VMEM_LIMIT_BYTES,
        ),
    )(x_bdn, pn)

    # (B, K, HW) -> (B, K, H, W): pure reshape (no transpose).
    dots = dots_bkn.reshape(B, K, H, W)
    return proto_out, dots


def _reference(x_nchw, proto_embed, *, temp=TEMP, eps=EPS):
    """Pure-JAX reference mirroring the PyTorch forward."""
    B = x_nchw.shape[0]
    protos = jnp.broadcast_to(proto_embed[None], (B,) + proto_embed.shape)
    pn = protos / jnp.maximum(
        jnp.linalg.norm(protos, axis=2, keepdims=True), NORM_EPS)
    xn = x_nchw / jnp.maximum(
        jnp.linalg.norm(x_nchw, axis=1, keepdims=True), NORM_EPS)
    dots = jnp.einsum('bkd,bdhw->bkhw', pn, xn)
    attn = jax.nn.softmax(dots / temp, axis=1) + eps
    attn_n = attn / jnp.sum(attn, axis=(2, 3), keepdims=True)
    proto_out = jnp.einsum('bdhw,bkhw->bkd', x_nchw, attn_n)
    return proto_out, dots


if __name__ == "__main__":
    key = jax.random.PRNGKey(0)
    kx, kp = jax.random.split(key)

    B, D, H, W = 2, 32, 16, 16       # x: (batch, dim_prototype, H, W)
    K = 8                            # num_prototype

    x = jax.random.normal(kx, (B, D, H, W), dtype=jnp.float32)
    # nn.Embedding default init ~ N(0, 1)
    proto_embed = jax.random.normal(kp, (K, D), dtype=jnp.float32)

    proto_out, dots = cluster_assignment(x, proto_embed)
    jax.block_until_ready((proto_out, dots))

    ref_proto, ref_dots = _reference(x, proto_embed)
    assert proto_out.shape == (B, K, D) and dots.shape == (B, K, H, W)
    assert jnp.allclose(dots, ref_dots, rtol=2e-2, atol=2e-2)
    assert jnp.allclose(proto_out, ref_proto, rtol=2e-2, atol=2e-2)

    print("KERNEL_OK")
</pallas_src>

<mosaic_0001>
module attributes {stable_mosaic.version = 11 : i64} {
  func.func @_cluster_assign_kernel(%arg0: i32, %arg1: memref<1x32x256xf32, #tpu.memory_space<vmem>>, %arg2: memref<8x32xf32, #tpu.memory_space<vmem>>, %arg3: memref<1x8x256xf32, #tpu.memory_space<vmem>>, %arg4: memref<1x8x32xf32, #tpu.memory_space<vmem>>) attributes {dimension_semantics = [#tpu.dimension_semantics<parallel>], iteration_bounds = array<i64: 2>, scalar_prefetch = 0 : i64, scratch_operands = 0 : i64, tpu.core_type = #tpu.core_type<tc>, window_params = [{transform_indices = @transform_0, window_bounds = array<i64: 1, 32, 256>}, {pipeline_mode = #tpu.pipeline_mode<synchronous>, transform_indices = @transform_1, window_bounds = array<i64: 8, 32>}, {transform_indices = @transform_2, window_bounds = array<i64: 1, 8, 256>}, {transform_indices = @transform_3, window_bounds = array<i64: 1, 8, 32>}]} {
    %c0 = arith.constant 0 : index
    %c0_0 = arith.constant 0 : index
    %0 = vector.load %arg2[%c0, %c0_0] : memref<8x32xf32, #tpu.memory_space<vmem>>, vector<8x32xf32>
    %c0_1 = arith.constant 0 : index
    %c0_2 = arith.constant 0 : index
    %c0_3 = arith.constant 0 : index
    %1 = vector.load %arg1[%c0_1, %c0_2, %c0_3] : memref<1x32x256xf32, #tpu.memory_space<vmem>>, vector<1x32x256xf32>
    %2 = vector.shape_cast %1 : vector<1x32x256xf32> to vector<32x256xf32>
    %3 = arith.mulf %2, %2 : vector<32x256xf32>
    %cst = arith.constant dense<0.000000e+00> : vector<256xf32>
    %4 = vector.multi_reduction <add>, %3, %cst [0] : vector<32x256xf32> to vector<256xf32>
    %5 = vector.shape_cast %4 : vector<256xf32> to vector<1x256xf32>
    %cst_4 = arith.constant 1.000000e-24 : f32
    %6 = vector.broadcast %cst_4 : f32 to vector<1x256xf32>
    %7 = arith.maximumf %5, %6 : vector<1x256xf32>
    %8 = math.rsqrt %7 : vector<1x256xf32>
    %cst_5 = arith.constant dense<0.000000e+00> : vector<8x256xf32>
    %9 = tpu.matmul %0, %2, %cst_5 {dimension_numbers = #tpu.dot_dimension_numbers<[1], [0], [0], [1], [0, 0, 1, 1], [], []>} : vector<8x32xf32>, vector<32x256xf32>, vector<8x256xf32> -> vector<8x256xf32>
    %10 = vector.broadcast %8 : vector<1x256xf32> to vector<8x256xf32>
    %11 = arith.mulf %9, %10 : vector<8x256xf32>
    %cst_6 = arith.constant 14.2857141 : f32
    %12 = vector.broadcast %cst_6 : f32 to vector<8x256xf32>
    %13 = arith.mulf %11, %12 : vector<8x256xf32>
    %cst_7 = arith.constant dense<0xFF800000> : vector<256xf32>
    %14 = vector.multi_reduction <maximumf>, %13, %cst_7 [0] : vector<8x256xf32> to vector<256xf32>
    %15 = vector.shape_cast %14 : vector<256xf32> to vector<1x256xf32>
    %16 = vector.broadcast %15 : vector<1x256xf32> to vector<8x256xf32>
    %17 = arith.subf %13, %16 : vector<8x256xf32>
    %18 = math.exp %17 : vector<8x256xf32>
    %cst_8 = arith.constant dense<0.000000e+00> : vector<256xf32>
    %19 = vector.multi_reduction <add>, %18, %cst_8 [0] : vector<8x256xf32> to vector<256xf32>
    %20 = vector.shape_cast %19 : vector<256xf32> to vector<1x256xf32>
    %21 = tpu.reciprocal %20 {approx = true} : vector<1x256xf32> -> vector<1x256xf32>
    %22 = vector.broadcast %21 : vector<1x256xf32> to vector<8x256xf32>
    %23 = arith.mulf %18, %22 : vector<8x256xf32>
    %cst_9 = arith.constant 9.99999997E-7 : f32
    %24 = vector.broadcast %cst_9 : f32 to vector<8x256xf32>
    %25 = arith.addf %23, %24 : vector<8x256xf32>
    %cst_10 = arith.constant dense<0.000000e+00> : vector<8xf32>
    %26 = vector.multi_reduction <add>, %25, %cst_10 [1] : vector<8x256xf32> to vector<8xf32>
    %27 = vector.shape_cast %26 : vector<8xf32> to vector<8x1xf32>
    %28 = tpu.reciprocal %27 {approx = true} : vector<8x1xf32> -> vector<8x1xf32>
    %29 = vector.broadcast %28 : vector<8x1xf32> to vector<8x256xf32>
    %30 = arith.mulf %25, %29 : vector<8x256xf32>
    %cst_11 = arith.constant dense<0.000000e+00> : vector<8x32xf32>
    %31 = tpu.matmul %30, %2, %cst_11 {dimension_numbers = #tpu.dot_dimension_numbers<[1], [1], [0], [0], [0, 0, 1, 0], [], []>} : vector<8x256xf32>, vector<32x256xf32>, vector<8x32xf32> -> vector<8x32xf32>
    %c0_12 = arith.constant 0 : index
    %c0_13 = arith.constant 0 : index
    %c0_14 = arith.constant 0 : index
    %32 = vector.load %arg3[%c0_12, %c0_13, %c0_14] : memref<1x8x256xf32, #tpu.memory_space<vmem>>, vector<1x8x256xf32>
    %33 = vector.shape_cast %32 : vector<1x8x256xf32> to vector<8x256xf32>
    %34 = vector.shape_cast %11 : vector<8x256xf32> to vector<1x8x256xf32>
    tpu.vector_store %arg3[%c0_12, %c0_13, %c0_14], %34 {strides = array<i32>} : memref<1x8x256xf32, #tpu.memory_space<vmem>>, vector<1x8x256xf32>,
    %c0_15 = arith.constant 0 : index
    %c0_16 = arith.constant 0 : index
    %c0_17 = arith.constant 0 : index
    %35 = vector.load %arg4[%c0_15, %c0_16, %c0_17] : memref<1x8x32xf32, #tpu.memory_space<vmem>>, vector<1x8x32xf32>
    %36 = vector.shape_cast %35 : vector<1x8x32xf32> to vector<8x32xf32>
    %37 = vector.shape_cast %31 : vector<8x32xf32> to vector<1x8x32xf32>
    tpu.vector_store %arg4[%c0_15, %c0_16, %c0_17], %37 {strides = array<i32>} : memref<1x8x32xf32, #tpu.memory_space<vmem>>, vector<1x8x32xf32>,
    return
  }
  func.func @transform_0(%arg0: i32) -> (i32, i32, i32) {
    %c0_i32 = arith.constant 0 : i32
    %c0_i32_0 = arith.constant 0 : i32
    %c0_i32_1 = arith.constant 0 : i32
    return %arg0, %c0_i32, %c0_i32_0 : i32, i32, i32
  }
  func.func @transform_1(%arg0: i32) -> (i32, i32) {
    %c0_i32 = arith.constant 0 : i32
    %c0_i32_0 = arith.constant 0 : i32
    %c0_i32_1 = arith.constant 0 : i32
    return %c0_i32, %c0_i32_0 : i32, i32
  }
  func.func @transform_2(%arg0: i32) -> (i32, i32, i32) {
    %c0_i32 = arith.constant 0 : i32
    %c0_i32_0 = arith.constant 0 : i32
    %c0_i32_1 = arith.constant 0 : i32
    return %arg0, %c0_i32, %c0_i32_0 : i32, i32, i32
  }
  func.func @transform_3(%arg0: i32) -> (i32, i32, i32) {
    %c0_i32 = arith.constant 0 : i32
    %c0_i32_0 = arith.constant 0 : i32
    %c0_i32_1 = arith.constant 0 : i32
    return %arg0, %c0_i32, %c0_i32_0 : i32, i32, i32
  }
}

</mosaic_0001>

<llo_original>
// kernel: tpu_custom_call.1
$region0: #{tpu_custom_call.1}
  #allocation0 [shape = 'u32[]', space=smem, size = 0x4, offset = 0x4, fixed_abs, tag = 'smem constant byte address 0x4 - core index']
  #allocation1 [shape = 'u32[144,128]{1,0:T(1,128)}', space=vmem, size = 0x12000, scoped, tag = 'internal scratch']
  %s0 = inlined_call_operand.hbm [shape: f32[2,32,256], index: 0, kind: input, shape index: {}]
  %s1 = inlined_call_operand.hbm [shape: f32[8,32], index: 1, kind: input, shape index: {}]
  %s2 = inlined_call_operand.hbm [shape: f32[2,8,256], index: 2, kind: output, shape index: {0}]
  %s3 = inlined_call_operand.hbm [shape: f32[2,8,32], index: 3, kind: output, shape index: {1}]
  %4 = xla_tuple %s2, %s3
  %s5 = sld [smem:[#allocation0]]
  $region57: #{tpu_custom_call.1} parent=0
    _
  %s7 = ssub.s32 1, %s5
  %s8 = scalar_select 0, %s7, %s5
  $region1: #{tpu_custom_call.1} parent=0
    #allocation2 [shape = 'u8[65536]{0}', space=vmem, size = 0x10000, scoped, tag = 'input window, operand 0']
    #allocation3 [shape = 's32[2]{0}', space=sflag, size = 0x8, scoped, tag = 'scoped memory for tpu_custom_call.1']
    #allocation4 [shape = 's32[2]{0}', space=sflag, size = 0x8, scoped, tag = 'scoped memory for tpu_custom_call.1']
    #allocation5 [shape = 'u8[4096]{0}', space=vmem, size = 0x1000, scoped, tag = 'input window, operand 1, single buffered']
    #allocation6 [shape = 's32[1]{0}', space=sflag, size = 0x4, scoped, tag = 'scoped memory for tpu_custom_call.1']
    #allocation7 [shape = 'u8[16384]{0}', space=vmem, size = 0x4000, scoped, tag = 'output window, operand 0']
    #allocation8 [shape = 'u8[8192]{0}', space=vmem, size = 0x2000, scoped, tag = 'output window, operand 1']
    #allocation9 [shape = 's32[2]{0}', space=sflag, size = 0x8, scoped, tag = 'scoped memory for tpu_custom_call.1']
    %9 = vsyncpa [#allocation3], 0
    %s10 = scalar_lea.sflag [#allocation3], 1
    %11 = vsyncpa %s10, 0
    %12 = vsyncpa [#allocation6], 0
    %13 = vsyncpa [#allocation4], 0
    %s14 = scalar_lea.sflag [#allocation4], 1
    %15 = vsyncpa %s14, 0
    %16 = vsyncpa [#allocation9], 0
    %s17 = scalar_lea.sflag [#allocation9], 1
    %18 = vsyncpa %s17, 0
    loop: start=0, step=1, limit=4
    $region2: #{tpu_custom_call.1} parent=1 // loop_pre_header
      _
    $region3: #{tpu_custom_call.1} parent=1 // loop_header
      %s20 = sphi 0, %s24
      %p21 = scmp.ge.s32.totalorder %s20, 4
      %s30 = sphi 0, %s32
      %s33 = sphi 0, %s30
      %s34 = sphi 0, %s33
      %s50 = sphi 0, %s34
      %s54 = sphi 0, %s54
      %s56 = sphi 0, %s54
      %s57 = sphi 0, %s56
      %s71 = sphi 0, %s57
      %s77 = sphi 0, %s79
      %s80 = sphi 0, %s77
      %s81 = sphi 0, %s80
      %s97 = sphi 0, %s81
      %s103 = sphi 0, %s105
      %s106 = sphi 0, %s103
      %s107 = sphi 0, %s106
      %s123 = sphi 0, %s107
    $region4: #{tpu_custom_call.1} parent=1 // loop_header_branch
      %23 = sbr.rel (%p21) target = $region8
    $region5: #{tpu_custom_call.1} parent=1 // loop_body
      %s25 = ssub.s32 %s20, 1
      %s26 = ssub.s32 %s20, 2
      %s27 = sadd.s32 %s20, 1
      %s28 = ssub.s32 %s20, %s27
      %p29 = scmp.eq.s32.totalorder %s28, 0
      %s31 = sadd.s32 %s30, 1
      %s32 = scalar_select %p29, %s30, %s31
      %p35 = pneg %p29
      %p36 = scmp.eq.s32.totalorder %s20, 1
      %p37 = por %p35, %p36
      %p38 = scmp.ne.s32.totalorder %s30, %s33
      %p39 = scmp.eq.s32.totalorder %s20, 0
      %p40 = por %p38, %p39
      %p41 = scmp.ne.s32.totalorder %s30, %s33
      %p42 = scmp.eq.s32.totalorder %s25, 1
      %p43 = por %p41, %p42
      %p44 = scmp.ne.s32.totalorder %s33, %s34
      %p45 = scmp.eq.s32.totalorder %s25, 0
      %p46 = por %p44, %p45
      %p47 = scmp.ne.s32.totalorder %s33, %s34
      %p48 = scmp.eq.s32.totalorder %s26, 1
      %p49 = por %p47, %p48
      %p51 = scmp.ne.s32.totalorder %s34, %s50
      %p52 = scmp.eq.s32.totalorder %s26, 0
      %p53 = por %p51, %p52
      %s55 = sadd.s32 %s54, 1
      %p58 = scmp.eq.s32.totalorder %s20, 1
      %p59 = scmp.ne.s32.totalorder %s54, %s56
      %p60 = scmp.eq.s32.totalorder %s20, 0
      %p61 = por %p59, %p60
      %p62 = scmp.ne.s32.totalorder %s54, %s56
      %p63 = scmp.eq.s32.totalorder %s25, 1
      %p64 = por %p62, %p63
      %p65 = scmp.ne.s32.totalorder %s56, %s57
      %p66 = scmp.eq.s32.totalorder %s25, 0
      %p67 = por %p65, %p66
      %p68 = scmp.ne.s32.totalorder %s56, %s57
      %p69 = scmp.eq.s32.totalorder %s26, 1
      %p70 = por %p68, %p69
      %p72 = scmp.ne.s32.totalorder %s57, %s71
      %p73 = scmp.eq.s32.totalorder %s26, 0
      %p74 = por %p72, %p73
      %s75 = ssub.s32 %s20, %s27
      %p76 = scmp.eq.s32.totalorder %s75, 0
      %s78 = sadd.s32 %s77, 1
      %s79 = scalar_select %p76, %s77, %s78
      %p82 = pneg %p76
      %p83 = scmp.eq.s32.totalorder %s20, 1
      %p84 = por %p82, %p83
      %p85 = scmp.ne.s32.totalorder %s77, %s80
      %p86 = scmp.eq.s32.totalorder %s20, 0
      %p87 = por %p85, %p86
      %p88 = scmp.ne.s32.totalorder %s77, %s80
      %p89 = scmp.eq.s32.totalorder %s25, 1
      %p90 = por %p88, %p89
      %p91 = scmp.ne.s32.totalorder %s80, %s81
      %p92 = scmp.eq.s32.totalorder %s25, 0
      %p93 = por %p91, %p92
      %p94 = scmp.ne.s32.totalorder %s80, %s81
      %p95 = scmp.eq.s32.totalorder %s26, 1
      %p96 = por %p94, %p95
      %p98 = scmp.ne.s32.totalorder %s81, %s97
      %p99 = scmp.eq.s32.totalorder %s26, 0
      %p100 = por %p98, %p99
      %s101 = ssub.s32 %s20, %s27
      %p102 = scmp.eq.s32.totalorder %s101, 0
      %s104 = sadd.s32 %s103, 1
      %s105 = scalar_select %p102, %s103, %s104
      %p108 = pneg %p102
      %p109 = scmp.eq.s32.totalorder %s20, 1
      %p110 = por %p108, %p109
      %p111 = scmp.ne.s32.totalorder %s103, %s106
      %p112 = scmp.eq.s32.totalorder %s20, 0
      %p113 = por %p111, %p112
      %p114 = scmp.ne.s32.totalorder %s103, %s106
      %p115 = scmp.eq.s32.totalorder %s25, 1
      %p116 = por %p114, %p115
      %p117 = scmp.ne.s32.totalorder %s106, %s107
      %p118 = scmp.eq.s32.totalorder %s25, 0
      %p119 = por %p117, %p118
      %p120 = scmp.ne.s32.totalorder %s106, %s107
      %p121 = scmp.eq.s32.totalorder %s26, 1
      %p122 = por %p120, %p121
      %p124 = scmp.ne.s32.totalorder %s107, %s123
      %p125 = scmp.eq.s32.totalorder %s26, 0
      %p126 = por %p124, %p125
      %p127 = scmp.le.s32.totalorder 1, %s20
      %p128 = scmp.lt.s32.totalorder %s20, 3
      %p129 = pnand %p127, %p128
      %p130 = pneg %p129
      // Predicated region
      $region9: #{tpu_custom_call.1} parent=5 // pred_check
        _
      $region10: #{tpu_custom_call.1} parent=5 // pred_check_branch
        %132 = sbr.rel (%p129) target = $region12
      $region11: #{tpu_custom_call.1} parent=5 // pred_region
        %s133 = ssub.s32 %s20, 1
        // Predicated region
        $region13: #{tpu_custom_call.1} parent=11 // pred_check
          %p134 = pneg %p67
        $region14: #{tpu_custom_call.1} parent=11 // pred_check_branch
          %136 = sbr.rel (%p134) target = $region16
        $region15: #{tpu_custom_call.1} parent=11 // pred_region
          %s138 = ssub.s32 128, 128
          %139 = vsyncadd [#allocation6], %s138
          %s141 = sshll.u32 [#allocation5], 4
          %s142 = int_to_ptr.vmem [resolvable:$true] %s141
          %144 = dma.hbm_to_vmem [thread:$0]  %s1, 128, %s142, [#allocation6]
        $region16: #{tpu_custom_call.1} parent=11 // pred_fallthru
          _
      $region12: #{tpu_custom_call.1} parent=5 // pred_fallthru
        _
      %p145 = scmp.lt.s32.totalorder %s20, 2
      // Predicated region
      $region17: #{tpu_custom_call.1} parent=5 // pred_check
        %p146 = pneg %p145
      $region18: #{tpu_custom_call.1} parent=5 // pred_check_branch
        %148 = sbr.rel (%p146) target = $region20
      $region19: #{tpu_custom_call.1} parent=5 // pred_region
        // Predicated region
        $region21: #{tpu_custom_call.1} parent=19 // pred_check
          %p149 = pneg %p40
        $region22: #{tpu_custom_call.1} parent=19 // pred_check_branch
          %151 = sbr.rel (%p149) target = $region24
        $region23: #{tpu_custom_call.1} parent=19 // pred_region
          %s152 = sand.u32 %s30, 1
          %s153 = scalar_lea.sflag [#allocation3], %s152
          %s154 = sand.u32 %s30, 1
          %s155 = smul.addr %s154, 64
          %s156 = scalar_lea.vmem [#allocation2], %s155
          %s158 = ssub.s32 1024, 1024
          %159 = vsyncadd %s153, %s158
          %s160 = smul.addr %s20, 8
          %s161 = smul.addr %s160, 128
          %s162 = scalar_lea.hbm %s0, %s161
          %s163 = sshll.u32 %s156, 4
          %s164 = int_to_ptr.vmem [resolvable:$true] %s163
          %169 = dma.hbm_to_vmem [thread:$0]  %s162, 1024, %s164, %s153, 256, 256, 16
        $region24: #{tpu_custom_call.1} parent=19 // pred_fallthru
          _
      $region20: #{tpu_custom_call.1} parent=5 // pred_fallthru
        _
      %p170 = scmp.le.s32.totalorder 1, %s20
      %p171 = scmp.lt.s32.totalorder %s20, 3
      %p172 = pnand %p170, %p171
      %p173 = pneg %p172
      // Predicated region
      $region25: #{tpu_custom_call.1} parent=5 // pred_check
        _
      $region26: #{tpu_custom_call.1} parent=5 // pred_check_branch
        %175 = sbr.rel (%p172) target = $region28
      $region27: #{tpu_custom_call.1} parent=5 // pred_region
        %s176 = ssub.s32 %s20, 1
        %s177 = sand.u32 %s33, 1
        %s178 = scalar_lea.sflag [#allocation3], %s177
        %s179 = sand.u32 %s33, 1
        %s180 = smul.addr %s179, 64
        %s181 = scalar_lea.vmem [#allocation2], %s180
        // Predicated region
        $region29: #{tpu_custom_call.1} parent=27 // pred_check
          %p182 = pneg %p46
        $region30: #{tpu_custom_call.1} parent=27 // pred_check_branch
          %184 = sbr.rel (%p182) target = $region32
        $region31: #{tpu_custom_call.1} parent=27 // pred_region
          %185 = dma.done %s178, 1024
        $region32: #{tpu_custom_call.1} parent=27 // pred_fallthru
          _
        // Predicated region
        $region33: #{tpu_custom_call.1} parent=27 // pred_check
          %p186 = pneg %p67
        $region34: #{tpu_custom_call.1} parent=27 // pred_check_branch
          %188 = sbr.rel (%p186) target = $region36
        $region35: #{tpu_custom_call.1} parent=27 // pred_region
          %189 = dma.done [#allocation6], 128
        $region36: #{tpu_custom_call.1} parent=27 // pred_fallthru
          _
        %s190 = sand.u32 %s33, 1
        %s191 = scalar_lea.sflag [#allocation3], %s190
        %s192 = sand.u32 %s33, 1
        %s193 = smul.addr %s192, 64
        %s194 = scalar_lea.vmem [#allocation2], %s193
        %p195 = pneg %p46
        %p196 = pneg %p43
        %p197 = pneg %p67
        %p198 = pneg %p64
        %p199 = pneg %p93
        %p200 = pneg %p90
        %s201 = sand.u32 %s80, 1
        %s202 = scalar_lea.sflag [#allocation4], %s201
        %s203 = sand.u32 %s80, 1
        %s204 = smul.addr %s203, 16
        %s205 = scalar_lea.vmem [#allocation7], %s204
        %p206 = pneg %p119
        %p207 = pneg %p116
        %s208 = sand.u32 %s106, 1
        %s209 = scalar_lea.sflag [#allocation9], %s208
        %s210 = sand.u32 %s106, 1
        %s211 = smul.addr %s210, 8
        %s212 = scalar_lea.vmem [#allocation8], %s211
        %v213 = vld [vmem:[#allocation5] sm:$0xff]
        %v214 = vld [vmem:[%s181] sm:$0xff]
        %v215 = vld [vmem:[%s181 + $0x8] sm:$0xff]
        %v216 = vld [vmem:[%s181 + $0x10] sm:$0xff]
        %v217 = vld [vmem:[%s181 + $0x18] sm:$0xff]
        %v218 = vld [vmem:[%s181 + $0x20] sm:$0xff]
        %v219 = vld [vmem:[%s181 + $0x28] sm:$0xff]
        %v220 = vld [vmem:[%s181 + $0x30] sm:$0xff]
        %v221 = vld [vmem:[%s181 + $0x38] sm:$0xff]
        %v222 = vmul.f32 %v214, %v214
        %v223 = vmul.f32 %v215, %v215
        %v224 = vmul.f32 %v216, %v216
        %v225 = vmul.f32 %v217, %v217
        %v226 = vmul.f32 %v218, %v218
        %v227 = vmul.f32 %v219, %v219
        %v228 = vmul.f32 %v220, %v220
        %v229 = vmul.f32 %v221, %v221
        %v230 = vadd.f32 %v222, %v224
        %v231 = vadd.f32 %v230, %v226
        %v232 = vadd.f32 %v231, %v228
        %v233 = vrot.slane %v232, 4
        %v234 = vadd.f32 %v232, %v233
        %v235 = vrot.slane %v234, 2
        %v236 = vadd.f32 %v234, %v235
        %v237 = vrot.slane %v236, 1
        %v238 = vadd.f32 %v236, %v237
        %v239 = vadd.f32 %v223, %v225
        %v240 = vadd.f32 %v239, %v227
        %v241 = vadd.f32 %v240, %v229
        %v242 = vrot.slane %v241, 4
        %v243 = vadd.f32 %v241, %v242
        %v244 = vrot.slane %v243, 2
        %v245 = vadd.f32 %v243, %v244
        %v246 = vrot.slane %v245, 1
        %v247 = vadd.f32 %v245, %v246
        %v248 = vmax.f32 %v238, 1e-24
        %v249 = vmax.f32 %v247, 1e-24
        %v250 = vrsqrt.pop %v248
        %v251 = vrsqrt.pop %v249
        %vm252 = vcmask 261120
        %v254 = vsel %vm252, %v213, 0
        %256 = vmatprep.subr.mxu0 %v215
        %257 = vmatpush1.msra.mxu0 %v214
        %258 = vmatprep.subr.mxu0 %v217
        %259 = vmatpush1.msra.mxu0 %v216
        %260 = vmatprep.subr.mxu0 %v219
        %261 = vmatpush1.msra.mxu0 %v218
        %262 = vmatprep.subr.mxu0 %v221
        %263 = vmatpush1.msra.mxu0 %v220
        %264 = vmatprep.subr.mxu0 0.0
        %265 = vmatpush1.msra.mxu0 0.0
        %266 = vmatprep.subr.mxu0 0.0
        %267 = vmatpush1.msra.mxu0 0.0
        %268 = vmatprep.subr.mxu0 0.0
        %269 = vmatpush1.msra.mxu0 0.0
        %270 = vmatprep.subr.mxu0 0.0
        %271 = vmatpush1.msra.mxu0 0.0
        %272 = vmatprep.subr.mxu0 0.0
        %273 = vmatpush1.msra.mxu0 0.0
        %274 = vmatprep.subr.mxu0 0.0
        %275 = vmatpush1.msra.mxu0 0.0
        %276 = vmatprep.subr.mxu0 0.0
        %277 = vmatpush1.msra.mxu0 0.0
        %278 = vmatprep.subr.mxu0 0.0
        %279 = vmatpush1.msra.mxu0 0.0
        %280 = vmatprep.subr.mxu0 0.0
        %281 = vmatpush1.msra.mxu0 0.0
        %282 = vmatprep.subr.mxu0 0.0
        %283 = vmatpush1.msra.mxu0 0.0
        %284 = vmatprep.subr.mxu0 0.0
        %285 = vmatpush1.msra.mxu0 0.0
        %286 = vmatprep.subr.mxu0 0.0
        %287 = vmatpush1.msra.mxu0 0.0
        %288 = vmatprep.subr.mxu0 0.0
        %289 = vmatpush1.msra.mxu0 0.0
        %290 = vmatprep.subr.mxu0 0.0
        %291 = vmatpush1.msra.mxu0 0.0
        %292 = vmatprep.subr.mxu0 0.0
        %293 = vmatpush1.msra.mxu0 0.0
        %294 = vmatprep.subr.mxu0 0.0
        %295 = vmatpush1.msra.mxu0 0.0
        %296 = vmatprep.subr.mxu0 0.0
        %297 = vmatpush1.msra.mxu0 0.0
        %298 = vmatprep.subr.mxu0 0.0
        %299 = vmatpush1.msra.mxu0 0.0
        %300 = vmatprep.subr.mxu0 0.0
        %301 = vmatpush1.msra.mxu0 0.0
        %302 = vmatprep.subr.mxu0 0.0
        %303 = vmatpush1.msra.mxu0 0.0
        %304 = vmatprep.subr.mxu0 0.0
        %305 = vmatpush1.msra.mxu0 0.0
        %306 = vmatprep.subr.mxu0 0.0
        %307 = vmatpush1.msra.mxu0 0.0
        %308 = vmatprep.subr.mxu0 0.0
        %309 = vmatpush1.msra.mxu0 0.0
        %310 = vmatprep.subr.mxu0 0.0
        %311 = vmatpush1.msra.mxu0 0.0
        %312 = vmatprep.subr.mxu0 0.0
        %313 = vmatpush1.msra.mxu0 0.0
        %314 = vmatprep.subr.mxu0 0.0
        %315 = vmatpush1.msra.mxu0 0.0
        %316 = vmatprep.subr.mxu0 0.0
        %317 = vmatpush1.msra.mxu0 0.0
        %318 = vmatprep.subr.mxu0 0.0
        %319 = vmatpush1.msra.mxu0 0.0
        %320 = vmatprep.mubr.f32.mxu0 0.0
        %321 = vmatmul.mubr.f32.gmra.mrb[0].mxu0 %v254
        %v322 = vpop.f32.mrb[0].mxu0
        %v323 = vadd.f32 0.0, %v322
        %v324 = vpop.f32.mrb[0].mxu0
        %v325 = vadd.f32 0.0, %v324
        %326 = vdwg.mxu0
        %v327 = vmul.f32 %v323, %v250
        %v328 = vmul.f32 %v325, %v251
        %v329 = vmul.f32 %v327, 14.285714
        %v330 = vmul.f32 %v328, 14.285714
        %v331 = vrot.slane %v329, 4
        %v332 = vmax.f32 %v329, %v331
        %v333 = vrot.slane %v332, 2
        %v334 = vmax.f32 %v332, %v333
        %v335 = vrot.slane %v334, 1
        %v336 = vmax.f32 %v334, %v335
        %v337 = vrot.slane %v330, 4
        %v338 = vmax.f32 %v330, %v337
        %v339 = vrot.slane %v338, 2
        %v340 = vmax.f32 %v338, %v339
        %v341 = vrot.slane %v340, 1
        %v342 = vmax.f32 %v340, %v341
        %v343 = vsub.f32 %v329, %v336
        %v344 = vsub.f32 %v330, %v342
        %v345 = vmul.f32 %v343, 1.442695
        %v346 = vpow.pop %v345
        %v347 = vmul.f32 %v344, 1.442695
        %v348 = vpow.pop %v347
        %v349 = vrot.slane %v346, 4
        %v350 = vadd.f32 %v346, %v349
        %v351 = vrot.slane %v350, 2
        %v352 = vadd.f32 %v350, %v351
        %v353 = vrot.slane %v352, 1
        %v354 = vadd.f32 %v352, %v353
        %v355 = vrot.slane %v348, 4
        %v356 = vadd.f32 %v348, %v355
        %v357 = vrot.slane %v356, 2
        %v358 = vadd.f32 %v356, %v357
        %v359 = vrot.slane %v358, 1
        %v360 = vadd.f32 %v358, %v359
        %v361 = vrcp.pop %v354
        %v362 = vrcp.pop %v360
        %v363 = vmul.f32 %v346, %v361
        %v364 = vmul.f32 %v348, %v362
        %v365 = vadd.f32 %v363, 1e-06
        %v366 = vadd.f32 %v364, 1e-06
        %v367 = vadd.f32 %v365, %v366
        %368 = vadd.xlane.f32.xlu0 %v367
        %v369 = vpop.xlane.xlu0 %368
        %v370 = vrcp.pop %v369
        %v371 = vmul.f32 %v365, %v370
        %v372 = vmul.f32 %v366, %v370
        %373 = vmatprep.subr.mxu0 %v215
        %374 = vmatpush1.xpose.msra.mxu0 %v214
        %375 = vmatprep.subr.mxu0 %v217
        %376 = vmatpush1.xpose.msra.mxu0 %v216
        %377 = vmatprep.subr.mxu0 %v219
        %378 = vmatpush1.xpose.msra.mxu0 %v218
        %379 = vmatprep.subr.mxu0 %v221
        %380 = vmatpush1.xpose.msra.mxu0 %v220
        %381 = vmatprep.subr.mxu0 0.0
        %382 = vmatpush1.xpose.msra.mxu0 0.0
        %383 = vmatprep.subr.mxu0 0.0
        %384 = vmatpush1.xpose.msra.mxu0 0.0
        %385 = vmatprep.subr.mxu0 0.0
        %386 = vmatpush1.xpose.msra.mxu0 0.0
        %387 = vmatprep.subr.mxu0 0.0
        %388 = vmatpush1.xpose.msra.mxu0 0.0
        %389 = vmatprep.subr.mxu0 0.0
        %390 = vmatpush1.xpose.msra.mxu0 0.0
        %391 = vmatprep.subr.mxu0 0.0
        %392 = vmatpush1.xpose.msra.mxu0 0.0
        %393 = vmatprep.subr.mxu0 0.0
        %394 = vmatpush1.xpose.msra.mxu0 0.0
        %395 = vmatprep.subr.mxu0 0.0
        %396 = vmatpush1.xpose.msra.mxu0 0.0
        %397 = vmatprep.subr.mxu0 0.0
        %398 = vmatpush1.xpose.msra.mxu0 0.0
        %399 = vmatprep.subr.mxu0 0.0
        %400 = vmatpush1.xpose.msra.mxu0 0.0
        %401 = vmatprep.subr.mxu0 0.0
        %402 = vmatpush1.xpose.msra.mxu0 0.0
        %403 = vmatprep.subr.mxu0 0.0
        %404 = vmatpush1.xpose.msra.mxu0 0.0
        %405 = vmatprep.subr.mxu0 0.0
        %406 = vmatpush1.xpose.msra.mxu0 0.0
        %407 = vmatprep.subr.mxu0 0.0
        %408 = vmatpush1.xpose.msra.mxu0 0.0
        %409 = vmatprep.subr.mxu0 0.0
        %410 = vmatpush1.xpose.msra.mxu0 0.0
        %411 = vmatprep.subr.mxu0 0.0
        %412 = vmatpush1.xpose.msra.mxu0 0.0
        %413 = vmatprep.subr.mxu0 0.0
        %414 = vmatpush1.xpose.msra.mxu0 0.0
        %415 = vmatprep.subr.mxu0 0.0
        %416 = vmatpush1.xpose.msra.mxu0 0.0
        %417 = vmatprep.subr.mxu0 0.0
        %418 = vmatpush1.xpose.msra.mxu0 0.0
        %419 = vmatprep.subr.mxu0 0.0
        %420 = vmatpush1.xpose.msra.mxu0 0.0
        %421 = vmatprep.subr.mxu0 0.0
        %422 = vmatpush1.xpose.msra.mxu0 0.0
        %423 = vmatprep.subr.mxu0 0.0
        %424 = vmatpush1.xpose.msra.mxu0 0.0
        %425 = vmatprep.subr.mxu0 0.0
        %426 = vmatpush1.xpose.msra.mxu0 0.0
        %427 = vmatprep.subr.mxu0 0.0
        %428 = vmatpush1.xpose.msra.mxu0 0.0
        %429 = vmatprep.subr.mxu0 0.0
        %430 = vmatpush1.xpose.msra.mxu0 0.0
        %431 = vmatprep.subr.mxu0 0.0
        %432 = vmatpush1.xpose.msra.mxu0 0.0
        %433 = vmatprep.subr.mxu0 0.0
        %434 = vmatpush1.xpose.msra.mxu0 0.0
        %435 = vmatprep.subr.mxu0 0.0
        %436 = vmatpush1.xpose.msra.mxu0 0.0
        %437 = vmatprep.mubr.f32.mxu0 %v372
        %438 = vmatmul.mubr.f32.gmra.mrb[0].mxu0 %v371
        %v439 = vpop.f32.mrb[0].mxu0
        %v440 = vadd.f32 0.0, %v439
        %v441 = vpop.f32.mrb[0].mxu0
        %442 = vdwg.mxu0
        %443 = vst [vmem:[%s205] sm:$0xff] %v327
        %444 = vst [vmem:[%s205 + $0x8] sm:$0xff] %v328
        %445 = vst.msk [vmem:[%s212] sm:$0xff] %vm252, %v440
        %s446 = sand.u32 %s80, 1
        %s447 = scalar_lea.sflag [#allocation4], %s446
        %s448 = sand.u32 %s80, 1
        %s449 = smul.addr %s448, 16
        %s450 = scalar_lea.vmem [#allocation7], %s449
        %s451 = sand.u32 %s106, 1
        %s452 = scalar_lea.sflag [#allocation9], %s451
        %s453 = sand.u32 %s106, 1
        %s454 = smul.addr %s453, 8
        %s455 = scalar_lea.vmem [#allocation8], %s454
        // Predicated region
        $region37: #{tpu_custom_call.1} parent=27 // pred_check
          %p456 = pneg %p90
        $region38: #{tpu_custom_call.1} parent=27 // pred_check_branch
          %458 = sbr.rel (%p456) target = $region40
        $region39: #{tpu_custom_call.1} parent=27 // pred_region
          %s460 = ssub.s32 256, 256
          %461 = vsyncadd %s447, %s460
          %s462 = smul.addr %s25, 2
          %s463 = smul.addr %s462, 128
          %s464 = scalar_lea.hbm %s2, %s463
          %s466 = sshll.u32 %s450, 4
          %s467 = int_to_ptr.vmem [resolvable:$true] %s466
          %469 = dma.vmem_to_hbm [thread:$0]  %s467, 256, %s464, %s447
        $region40: #{tpu_custom_call.1} parent=27 // pred_fallthru
          _
        // Predicated region
        $region41: #{tpu_custom_call.1} parent=27 // pred_check
          %p470 = pneg %p116
        $region42: #{tpu_custom_call.1} parent=27 // pred_check_branch
          %472 = sbr.rel (%p470) target = $region44
        $region43: #{tpu_custom_call.1} parent=27 // pred_region
          %s474 = ssub.s32 128, 128
          %475 = vsyncadd %s452, %s474
          %s476 = smul.addr %s25, 128
          %s477 = scalar_lea.hbm %s3, %s476
          %s479 = sshll.u32 %s455, 4
          %s480 = int_to_ptr.vmem [resolvable:$true] %s479
          %482 = dma.vmem_to_hbm [thread:$0]  %s480, 128, %s477, %s452
        $region44: #{tpu_custom_call.1} parent=27 // pred_fallthru
          _
      $region28: #{tpu_custom_call.1} parent=5 // pred_fallthru
        _
      %p483 = scmp.le.s32.totalorder 2, %s20
      // Predicated region
      $region45: #{tpu_custom_call.1} parent=5 // pred_check
        %p484 = pneg %p483
      $region46: #{tpu_custom_call.1} parent=5 // pred_check_branch
        %486 = sbr.rel (%p484) target = $region48
      $region47: #{tpu_custom_call.1} parent=5 // pred_region
        %s487 = ssub.s32 %s20, 2
        // Predicated region
        $region49: #{tpu_custom_call.1} parent=47 // pred_check
          %p488 = pneg %p96
        $region50: #{tpu_custom_call.1} parent=47 // pred_check_branch
          %490 = sbr.rel (%p488) target = $region52
        $region51: #{tpu_custom_call.1} parent=47 // pred_region
          %s491 = sand.u32 %s81, 1
          %s492 = scalar_lea.sflag [#allocation4], %s491
          %s493 = sand.u32 %s81, 1
          %s494 = smul.addr %s493, 16
          %s495 = scalar_lea.vmem [#allocation7], %s494
          %496 = dma.done %s492, 256
        $region52: #{tpu_custom_call.1} parent=47 // pred_fallthru
          _
        // Predicated region
        $region53: #{tpu_custom_call.1} parent=47 // pred_check
          %p497 = pneg %p122
        $region54: #{tpu_custom_call.1} parent=47 // pred_check_branch
          %499 = sbr.rel (%p497) target = $region56
        $region55: #{tpu_custom_call.1} parent=47 // pred_region
          %s500 = sand.u32 %s107, 1
          %s501 = scalar_lea.sflag [#allocation9], %s500
          %s502 = sand.u32 %s107, 1
          %s503 = smul.addr %s502, 8
          %s504 = scalar_lea.vmem [#allocation8], %s503
          %505 = dma.done %s501, 128
        $region56: #{tpu_custom_call.1} parent=47 // pred_fallthru
          _
      $region48: #{tpu_custom_call.1} parent=5 // pred_fallthru
        _
    $region6: #{tpu_custom_call.1} parent=1 // loop_footer
      %s24 = sadd.s32 1, %s20
    $region7: #{tpu_custom_call.1} parent=1 // loop_footer_branch
      %19 = sbr.rel target = $region3
    $region8: #{tpu_custom_call.1} parent=1 // loop_exit
      _
    %506 = vsyncpa [#allocation3], 1
    %s507 = scalar_lea.sflag [#allocation3], 1
    %508 = vsyncpa %s507, 1
    %509 = vsyncpa [#allocation6], 1
    %510 = vsyncpa [#allocation4], 1
    %s511 = scalar_lea.sflag [#allocation4], 1
    %512 = vsyncpa %s511, 1
    %513 = vsyncpa [#allocation9], 1
    %s514 = scalar_lea.sflag [#allocation9], 1
    %515 = vsyncpa %s514, 1

</llo_original>
